<compile_context>
chip_gen: v5e
topology: v5e:2x2
jax: 0.10.0
libtpu: 0.0.40
codegen_flags: <defaults>
</compile_context>

<pallas_src>
import jax
import jax.numpy as jnp
from jax.experimental import pallas as pl
from jax.experimental.pallas import tpu as pltpu


# ----------------------------------------------------------------------------
# Kernel
# ----------------------------------------------------------------------------
def _gru_seq_kernel(tok_ref, emb_gi_ref, whh_ref, bhh_ref, h0_ref,
                    out_ref, h_scr):
    """grid=(T,): one GRU step per grid iteration.

    tok_ref    : (T,)    int32, SMEM (scalar-prefetched token ids)
    emb_gi_ref : (V, 3H) f32,   VMEM-resident folded table E @ W_ih^T + b_ih
    whh_ref    : (H, 3H) bf16,  VMEM-resident W_hh^T (MXU operand)
    bhh_ref    : (1, 3H) f32
    h0_ref     : (1, H)  f32 initial hidden state
    out_ref    : (T, H)  f32, single resident output block (constant index);
                 row t written per step, flushed to HBM once after the grid
    h_scr      : (1, H)  f32 VMEM scratch carrying the hidden state
    """
    t = pl.program_id(0)
    H = h0_ref.shape[1]
    V = emb_gi_ref.shape[0]

    @pl.when(t == 0)
    def _():
        h_scr[...] = h0_ref[...]

    # torch.nn.Embedding raises on out-of-range ids; no in-kernel exception
    # path on TPU, so clamp to keep the read in-bounds and deterministic.
    tok = jnp.clip(tok_ref[t], 0, V - 1)
    gi = emb_gi_ref[pl.ds(tok, 1), :]                 # (1, 3H) f32, b_ih folded

    h = h_scr[...]                                    # (1, H) f32
    # Recurrent projection: bf16 MXU operands, f32 accumulation.
    gh = jnp.dot(h.astype(whh_ref.dtype), whh_ref[...],
                 preferred_element_type=jnp.float32) + bhh_ref[...]

    # Gate math entirely in f32 (PyTorch GRU gate order: r, z, n).
    r = jax.nn.sigmoid(gi[:, 0:H] + gh[:, 0:H])
    z = jax.nn.sigmoid(gi[:, H:2 * H] + gh[:, H:2 * H])
    n = jnp.tanh(gi[:, 2 * H:] + r * gh[:, 2 * H:])
    h_new = (1.0 - z) * n + z * h

    h_scr[...] = h_new
    out_ref[pl.ds(t, 1), :] = h_new


# ----------------------------------------------------------------------------
# Wrappers
# ----------------------------------------------------------------------------
def _vmem_limit_bytes(T, V, H):
    f32, bf16 = 4, 2
    resident = (V * 3 * H * f32      # folded table
                + H * 3 * H * bf16   # W_hh^T
                + 3 * H * f32        # b_hh
                + H * f32            # h0
                + T * H * f32        # resident output block
                + H * f32)           # hidden scratch
    # x2 for default double-buffering + headroom; clamp inside v7x's 64 MiB.
    return int(min(max(2 * resident + (1 << 20), 16 << 20), 48 << 20))


def _gru_sequence(tokens, h0, kparams):
    """Run T GRU steps in a single pallas_call. Returns (T, H) hidden states."""
    emb_gi = kparams["emb_gi"]            # (V, 3H) f32
    whh_t = kparams["whh_t"]              # (H, 3H) bf16
    bhh = kparams["bhh"]                  # (1, 3H) f32
    V, H = emb_gi.shape[0], whh_t.shape[0]

    tokens = tokens.reshape(-1).astype(jnp.int32)
    T = tokens.shape[0]
    h0 = h0.reshape(1, H).astype(jnp.float32)

    def const(shape):
        # Grid-invariant, VMEM-resident block; index_map receives the grid
        # index plus the scalar-prefetch ref.  For very large H on v7x
        # (64 MiB VMEM), tile the 3H axis on an extra grid dimension (or drop
        # the weight's double buffer) instead of keeping W_hh^T whole.
        return pl.BlockSpec(shape, lambda t, tok_ref, nd=len(shape): (0,) * nd)

    out = pl.pallas_call(
        _gru_seq_kernel,
        out_shape=jax.ShapeDtypeStruct((T, H), jnp.float32),
        grid_spec=pltpu.PrefetchScalarGridSpec(
            num_scalar_prefetch=1,
            grid=(T,),
            in_specs=[
                const((V, 3 * H)),        # folded embedding/input projection
                const((H, 3 * H)),        # W_hh^T
                const((1, 3 * H)),        # b_hh
                const((1, H)),            # initial hidden state
            ],
            # Whole (T, H) output as one resident block: rows are filled in
            # VMEM each step and written back to HBM once, lane+sublane dense.
            out_specs=pl.BlockSpec((T, H), lambda t, tok_ref: (0, 0)),
            scratch_shapes=[pltpu.VMEM((1, H), jnp.float32)],
        ),
        compiler_params=pltpu.CompilerParams(
            dimension_semantics=("arbitrary",),   # true recurrence over time
            vmem_limit_bytes=_vmem_limit_bytes(T, V, H),
        ),
    )(tokens, emb_gi, whh_t, bhh, h0)
    return out


def rnn_encoder_encode_sequence(tokens, hidden, kparams):
    """Encode a whole token sequence with ONE kernel launch.

    Mirrors torch.nn.GRU over a (T, 1, H) input: returns (outputs, hidden)
    with outputs = all hidden states (T, 1, H), hidden = last state (1, 1, H).
    """
    H = kparams["whh_t"].shape[0]
    hs = _gru_sequence(tokens, hidden, kparams)          # (T, H)
    T = hs.shape[0]
    return hs.reshape(T, 1, H), hs[T - 1:T].reshape(1, 1, H)


def rnn_encoder_forward(token, hidden, kparams):
    """Mirrors rnnEncoder.forward (single token): returns (output, hidden)."""
    outputs, h_last = rnn_encoder_encode_sequence(token.reshape(1), hidden,
                                                  kparams)
    return outputs, h_last        # both (1, 1, H); output == hidden for T == 1


# ----------------------------------------------------------------------------
# Parameters
# ----------------------------------------------------------------------------
def init_params(key, input_size, hidden_size):
    """torch-style params: Embedding ~ N(0,1), GRU ~ U(-1/sqrt(H), 1/sqrt(H))."""
    k_emb, k_wih, k_whh, k_bih, k_bhh = jax.random.split(key, 5)
    bound = 1.0 / jnp.sqrt(hidden_size)
    return {
        "embedding": jax.random.normal(k_emb, (input_size, hidden_size),
                                       jnp.float32),
        "wih": jax.random.uniform(k_wih, (3 * hidden_size, hidden_size),
                                  jnp.float32, -bound, bound),
        "whh": jax.random.uniform(k_whh, (3 * hidden_size, hidden_size),
                                  jnp.float32, -bound, bound),
        "bih": jax.random.uniform(k_bih, (3 * hidden_size,), jnp.float32,
                                  -bound, bound),
        "bhh": jax.random.uniform(k_bhh, (3 * hidden_size,), jnp.float32,
                                  -bound, bound),
    }


def prepare_kernel_params(p):
    """Fold Embedding + input projection into one f32 table; bf16 only for the
    MXU operand W_hh^T."""
    H = p["whh"].shape[1]
    emb_gi = p["embedding"] @ p["wih"].T + p["bih"]      # (V, 3H), one-time f32
    return {
        "emb_gi": emb_gi.astype(jnp.float32),            # f32: only ever added
        "whh_t": p["whh"].T.astype(jnp.bfloat16),        # (H, 3H) MXU operand
        "bhh": p["bhh"].reshape(1, 3 * H).astype(jnp.float32),
    }


# ----------------------------------------------------------------------------
# Pure-JAX references
# ----------------------------------------------------------------------------
def _reference_step(token, hidden, p):
    H = p["whh"].shape[1]
    x = p["embedding"][token.reshape(())].reshape(1, H)
    h = hidden.reshape(1, H)
    gi = x @ p["wih"].T + p["bih"]
    gh = h @ p["whh"].T + p["bhh"]
    r = jax.nn.sigmoid(gi[:, :H] + gh[:, :H])
    z = jax.nn.sigmoid(gi[:, H:2 * H] + gh[:, H:2 * H])
    n = jnp.tanh(gi[:, 2 * H:] + r * gh[:, 2 * H:])
    h_new = (1.0 - z) * n + z * h
    return h_new.reshape(1, 1, H), h_new.reshape(1, 1, H)


def _reference_sequence(tokens, hidden, p):
    h = hidden
    outs = []
    for t in range(tokens.shape[0]):
        o, h = _reference_step(tokens[t:t + 1], h, p)
        outs.append(o)
    return jnp.concatenate(outs, axis=0), h


# ----------------------------------------------------------------------------
# Demo / self-test
# ----------------------------------------------------------------------------
if __name__ == "__main__":
    input_size = 16       # vocab size
    hidden_size = 128     # multiple of 128 -> lane-dense gate slices & stores

    key = jax.random.PRNGKey(0)
    params = init_params(key, input_size, hidden_size)
    kparams = prepare_kernel_params(params)

    token = jnp.array([3], dtype=jnp.int32)
    hidden_zero = jnp.zeros((1, 1, hidden_size), jnp.float32)   # initHidden()
    hidden_rand = 0.5 * jax.random.normal(jax.random.PRNGKey(1),
                                          (1, 1, hidden_size), jnp.float32)

    # --- single-step path (exactly rnnEncoder.forward) ---
    for hidden in (hidden_zero, hidden_rand):
        out, h_new = rnn_encoder_forward(token, hidden, kparams)
        out = jax.block_until_ready(out)
        h_new = jax.block_until_ready(h_new)

        ref_out, ref_h = _reference_step(token, hidden, params)
        assert out.shape == (1, 1, hidden_size)
        assert h_new.shape == (1, 1, hidden_size)
        # Only W_hh/h are bf16 MXU operands (f32 gi) -> tighter tolerance than
        # the previous bf16-table version.
        assert jnp.allclose(out, ref_out, atol=1e-2), "output mismatch"
        assert jnp.allclose(h_new, ref_h, atol=1e-2), "hidden mismatch"

    # --- amortized sequence path: one kernel launch for T tokens ---
    T = 8
    tokens = jax.random.randint(jax.random.PRNGKey(2), (T,), 0, input_size,
                                dtype=jnp.int32)
    outs, h_last = rnn_encoder_encode_sequence(tokens, hidden_rand, kparams)
    outs = jax.block_until_ready(outs)
    h_last = jax.block_until_ready(h_last)

    ref_outs, ref_last = _reference_sequence(tokens, hidden_rand, params)
    assert outs.shape == (T, 1, hidden_size)
    assert h_last.shape == (1, 1, hidden_size)
    # bf16 recurrent matmul error compounds mildly over T steps.
    assert jnp.allclose(outs, ref_outs, atol=2e-2), "sequence output mismatch"
    assert jnp.allclose(h_last, ref_last, atol=2e-2), "sequence hidden mismatch"

    print("KERNEL_OK")
</pallas_src>

<mosaic_0001>
module attributes {stable_mosaic.version = 11 : i64} {
  func.func @_gru_seq_kernel(%arg0: i32, %arg1: memref<1xi32, #tpu.memory_space<smem>>, %arg2: memref<16x384xf32, #tpu.memory_space<vmem>>, %arg3: memref<128x384xbf16, #tpu.memory_space<vmem>>, %arg4: memref<1x384xf32, #tpu.memory_space<vmem>>, %arg5: memref<1x128xf32, #tpu.memory_space<vmem>>, %arg6: memref<1x128xf32, #tpu.memory_space<vmem>>, %arg7: memref<1x128xf32, #tpu.memory_space<vmem>>) attributes {dimension_semantics = [#tpu.dimension_semantics<arbitrary>], iteration_bounds = array<i64: 1>, scalar_prefetch = 1 : i64, scratch_operands = 1 : i64, tpu.core_type = #tpu.core_type<tc>, window_params = [{pipeline_mode = #tpu.pipeline_mode<synchronous>, transform_indices = @transform_0, window_bounds = array<i64: 16, 384>}, {pipeline_mode = #tpu.pipeline_mode<synchronous>, transform_indices = @transform_1, window_bounds = array<i64: 128, 384>}, {pipeline_mode = #tpu.pipeline_mode<synchronous>, transform_indices = @transform_2, window_bounds = array<i64: 1, 384>}, {pipeline_mode = #tpu.pipeline_mode<synchronous>, transform_indices = @transform_3, window_bounds = array<i64: 1, 128>}, {pipeline_mode = #tpu.pipeline_mode<synchronous>, transform_indices = @transform_4, window_bounds = array<i64: 1, 128>}]} {
    %c0_i32 = arith.constant 0 : i32
    %0 = arith.cmpi eq, %arg0, %c0_i32 : i32
    %1 = arith.extui %0 : i1 to i32
    %c0_i32_0 = arith.constant 0 : i32
    %2 = arith.cmpi ne, %1, %c0_i32_0 : i32
    scf.if %2 {
      %c0_14 = arith.constant 0 : index
      %c0_15 = arith.constant 0 : index
      %44 = vector.load %arg5[%c0_14, %c0_15] : memref<1x128xf32, #tpu.memory_space<vmem>>, vector<1x128xf32>
      %c0_16 = arith.constant 0 : index
      %c0_17 = arith.constant 0 : index
      %45 = vector.load %arg7[%c0_16, %c0_17] : memref<1x128xf32, #tpu.memory_space<vmem>>, vector<1x128xf32>
      tpu.vector_store %arg7[%c0_16, %c0_17], %44 {strides = array<i32>} : memref<1x128xf32, #tpu.memory_space<vmem>>, vector<1x128xf32>,
    } else {
    }
    %3 = arith.index_cast %arg0 : i32 to index
    %4 = memref.load %arg1[%3] : memref<1xi32, #tpu.memory_space<smem>>
    %c0_i32_1 = arith.constant 0 : i32
    %c15_i32 = arith.constant 15 : i32
    %5 = arith.maxsi %c0_i32_1, %4 : i32
    %6 = arith.minsi %c15_i32, %5 : i32
    %7 = arith.index_cast %6 : i32 to index
    %c0 = arith.constant 0 : index
    %8 = vector.load %arg2[%7, %c0] : memref<16x384xf32, #tpu.memory_space<vmem>>, vector<1x384xf32>
    %c0_2 = arith.constant 0 : index
    %c0_3 = arith.constant 0 : index
    %9 = vector.load %arg7[%c0_2, %c0_3] : memref<1x128xf32, #tpu.memory_space<vmem>>, vector<1x128xf32>
    %10 = arith.truncf %9 : vector<1x128xf32> to vector<1x128xbf16>
    %c0_4 = arith.constant 0 : index
    %c0_5 = arith.constant 0 : index
    %11 = vector.load %arg3[%c0_4, %c0_5] : memref<128x384xbf16, #tpu.memory_space<vmem>>, vector<128x384xbf16>
    %cst = arith.constant dense<0.000000e+00> : vector<1x384xf32>
    %12 = tpu.matmul %10, %11, %cst {dimension_numbers = #tpu.dot_dimension_numbers<[1], [0], [0], [1], [0, 0, 1, 1], [], []>} : vector<1x128xbf16>, vector<128x384xbf16>, vector<1x384xf32> -> vector<1x384xf32>
    %c0_6 = arith.constant 0 : index
    %c0_7 = arith.constant 0 : index
    %13 = vector.load %arg4[%c0_6, %c0_7] : memref<1x384xf32, #tpu.memory_space<vmem>>, vector<1x384xf32>
    %14 = arith.addf %12, %13 : vector<1x384xf32>
    %15 = vector.extract_strided_slice %8 {offsets = [0, 0], sizes = [1, 128], strides = [1, 1]} : vector<1x384xf32> to vector<1x128xf32>
    %16 = vector.extract_strided_slice %14 {offsets = [0, 0], sizes = [1, 128], strides = [1, 1]} : vector<1x384xf32> to vector<1x128xf32>
    %17 = arith.addf %15, %16 : vector<1x128xf32>
    %18 = arith.negf %17 : vector<1x128xf32>
    %19 = math.exp %18 : vector<1x128xf32>
    %cst_8 = arith.constant 1.000000e+00 : f32
    %20 = vector.broadcast %cst_8 : f32 to vector<1x128xf32>
    %21 = arith.addf %20, %19 : vector<1x128xf32>
    %22 = arith.divf %20, %21 : vector<1x128xf32>
    %23 = vector.extract_strided_slice %8 {offsets = [0, 128], sizes = [1, 128], strides = [1, 1]} : vector<1x384xf32> to vector<1x128xf32>
    %24 = vector.extract_strided_slice %14 {offsets = [0, 128], sizes = [1, 128], strides = [1, 1]} : vector<1x384xf32> to vector<1x128xf32>
    %25 = arith.addf %23, %24 : vector<1x128xf32>
    %26 = arith.negf %25 : vector<1x128xf32>
    %27 = math.exp %26 : vector<1x128xf32>
    %cst_9 = arith.constant 1.000000e+00 : f32
    %28 = vector.broadcast %cst_9 : f32 to vector<1x128xf32>
    %29 = arith.addf %28, %27 : vector<1x128xf32>
    %30 = arith.divf %28, %29 : vector<1x128xf32>
    %31 = vector.extract_strided_slice %8 {offsets = [0, 256], sizes = [1, 128], strides = [1, 1]} : vector<1x384xf32> to vector<1x128xf32>
    %32 = vector.extract_strided_slice %14 {offsets = [0, 256], sizes = [1, 128], strides = [1, 1]} : vector<1x384xf32> to vector<1x128xf32>
    %33 = arith.mulf %22, %32 : vector<1x128xf32>
    %34 = arith.addf %31, %33 : vector<1x128xf32>
    %35 = math.tanh %34 : vector<1x128xf32>
    %cst_10 = arith.constant 1.000000e+00 : f32
    %36 = vector.broadcast %cst_10 : f32 to vector<1x128xf32>
    %37 = arith.subf %36, %30 : vector<1x128xf32>
    %38 = arith.mulf %37, %35 : vector<1x128xf32>
    %39 = arith.mulf %30, %9 : vector<1x128xf32>
    %40 = arith.addf %38, %39 : vector<1x128xf32>
    %c0_11 = arith.constant 0 : index
    %c0_12 = arith.constant 0 : index
    %41 = vector.load %arg7[%c0_11, %c0_12] : memref<1x128xf32, #tpu.memory_space<vmem>>, vector<1x128xf32>
    tpu.vector_store %arg7[%c0_11, %c0_12], %40 {strides = array<i32>} : memref<1x128xf32, #tpu.memory_space<vmem>>, vector<1x128xf32>,
    %42 = arith.index_cast %arg0 : i32 to index
    %c0_13 = arith.constant 0 : index
    %43 = vector.load %arg6[%42, %c0_13] : memref<1x128xf32, #tpu.memory_space<vmem>>, vector<1x128xf32>
    tpu.vector_store %arg6[%42, %c0_13], %40 {strides = array<i32>} : memref<1x128xf32, #tpu.memory_space<vmem>>, vector<1x128xf32>,
    return
  }
  func.func @transform_0(%arg0: i32, %arg1: memref<1xi32, #tpu.memory_space<smem>>) -> (i32, i32) {
    %c0_i32 = arith.constant 0 : i32
    %c0_i32_0 = arith.constant 0 : i32
    %c0_i32_1 = arith.constant 0 : i32
    return %c0_i32, %c0_i32_0 : i32, i32
  }
  func.func @transform_1(%arg0: i32, %arg1: memref<1xi32, #tpu.memory_space<smem>>) -> (i32, i32) {
    %c0_i32 = arith.constant 0 : i32
    %c0_i32_0 = arith.constant 0 : i32
    %c0_i32_1 = arith.constant 0 : i32
    return %c0_i32, %c0_i32_0 : i32, i32
  }
  func.func @transform_2(%arg0: i32, %arg1: memref<1xi32, #tpu.memory_space<smem>>) -> (i32, i32) {
    %c0_i32 = arith.constant 0 : i32
    %c0_i32_0 = arith.constant 0 : i32
    %c0_i32_1 = arith.constant 0 : i32
    return %c0_i32, %c0_i32_0 : i32, i32
  }
  func.func @transform_3(%arg0: i32, %arg1: memref<1xi32, #tpu.memory_space<smem>>) -> (i32, i32) {
    %c0_i32 = arith.constant 0 : i32
    %c0_i32_0 = arith.constant 0 : i32
    %c0_i32_1 = arith.constant 0 : i32
    return %c0_i32, %c0_i32_0 : i32, i32
  }
  func.func @transform_4(%arg0: i32, %arg1: memref<1xi32, #tpu.memory_space<smem>>) -> (i32, i32) {
    %c0_i32 = arith.constant 0 : i32
    %c0_i32_0 = arith.constant 0 : i32
    %c0_i32_1 = arith.constant 0 : i32
    return %c0_i32, %c0_i32_0 : i32, i32
  }
}

</mosaic_0001>

<llo_original>
// kernel: tpu_custom_call.1
$region0: #{tpu_custom_call.1}
  #allocation0 [shape = 'u32[]', space=smem, size = 0x4, offset = 0x4, fixed_abs, tag = 'smem constant byte address 0x4 - core index']
  #allocation1 [shape = 'u32[72,128]{1,0:T(1,128)}', space=vmem, size = 0x9000, scoped, tag = 'internal scratch']
  #allocation2 [shape = 'f32[1,128]{1,0:T(1,128)}', space=vmem, size = 0x200, scoped, tag = 'scratch operand']
  #allocation3 [shape = 's32[1]{0}', space=sflag, size = 0x4, scoped, tag = 'scoped memory for tpu_custom_call.1']
  #allocation4 [shape = 's32[1]{0:T(128)S(6)}', space=smem, size = 0x200, scoped, tag = 'prefetched SMEM operand 0']
  %s0 = inlined_call_operand.<no memory space> [shape: s32[1], index: 0, kind: input, shape index: {}]
  %s1 = inlined_call_operand.hbm [shape: f32[16,384], index: 1, kind: input, shape index: {}]
  %s2 = inlined_call_operand.hbm [shape: bf16[128,384], index: 2, kind: input, shape index: {}]
  %s3 = inlined_call_operand.vmem [shape: f32[1,384], index: 3, kind: input, shape index: {}]
  %s4 = inlined_call_operand.vmem [shape: f32[1,128], index: 4, kind: input, shape index: {}]
  %s5 = inlined_call_operand.hbm [shape: f32[1,128], index: 5, kind: output, shape index: {}]
  %s6 = sld [smem:[#allocation0]]
  $region38: #{tpu_custom_call.1} parent=0
    _
  %s8 = ssub.s32 1, %s6
  %s9 = scalar_select 0, %s8, %s6
  %10 = sst [smem:[#allocation4]] %s0
  $region1: #{tpu_custom_call.1} parent=0
    #allocation5 [shape = 'u8[24576]{0}', space=vmem, size = 0x6000, scoped, tag = 'input window, operand 1, single buffered']
    #allocation6 [shape = 's32[1]{0}', space=sflag, size = 0x4, scoped, tag = 'scoped memory for tpu_custom_call.1']
    #allocation7 [shape = 's32[1]{0}', space=sflag, size = 0x4, scoped, tag = 'scoped memory for tpu_custom_call.1']
    #allocation8 [shape = 'u8[98304]{0}', space=vmem, size = 0x18000, scoped, tag = 'input window, operand 2, single buffered']
    #allocation9 [shape = 's32[1]{0}', space=sflag, size = 0x4, scoped, tag = 'scoped memory for tpu_custom_call.1']
    #allocation10 [shape = 'u8[512]{0}', space=vmem, size = 0x400, scoped, tag = 'output window, operand 0, single buffered']
    %11 = vsyncpa [#allocation6], 0
    %12 = vsyncpa [#allocation9], 0
    %13 = vsyncpa [#allocation7], 0
    // Predicated region
    $region2: #{tpu_custom_call.1} parent=1 // pred_check
      _
    $region3: #{tpu_custom_call.1} parent=1 // pred_check_branch
      %15 = sbr.rel (0) target = $region5
    $region4: #{tpu_custom_call.1} parent=1 // pred_region
      %17 = vsyncadd [#allocation6], 0
      %s18 = sshll.u32 %s1, 4
      %s19 = int_to_ptr.hbm [resolvable:$true] %s18
      %s20 = sshll.u32 [#allocation5], 4
      %s21 = int_to_ptr.vmem [resolvable:$true] %s20
      %26 = dma.hbm_to_vmem [thread:$0]  %s19, 768, %s21, [#allocation6], 384, 384, 24
    $region5: #{tpu_custom_call.1} parent=1 // pred_fallthru
      _
    // Predicated region
    $region6: #{tpu_custom_call.1} parent=1 // pred_check
      _
    $region7: #{tpu_custom_call.1} parent=1 // pred_check_branch
      %28 = sbr.rel (0) target = $region9
    $region8: #{tpu_custom_call.1} parent=1 // pred_region
      %30 = vsyncadd [#allocation9], 0
      %s31 = sshll.u32 %s2, 4
      %s32 = int_to_ptr.hbm [resolvable:$true] %s31
      %s33 = sshll.u32 [#allocation8], 4
      %s34 = int_to_ptr.vmem [resolvable:$true] %s33
      %39 = dma.hbm_to_vmem [thread:$0]  %s32, 3072, %s34, [#allocation9], 192, 192, 12
    $region9: #{tpu_custom_call.1} parent=1 // pred_fallthru
      _
    // Predicated region
    $region10: #{tpu_custom_call.1} parent=1 // pred_check
      _
    $region11: #{tpu_custom_call.1} parent=1 // pred_check_branch
      %41 = sbr.rel (0) target = $region13
    $region12: #{tpu_custom_call.1} parent=1 // pred_region
      _
    $region13: #{tpu_custom_call.1} parent=1 // pred_fallthru
      _
    // Predicated region
    $region14: #{tpu_custom_call.1} parent=1 // pred_check
      _
    $region15: #{tpu_custom_call.1} parent=1 // pred_check_branch
      %43 = sbr.rel (0) target = $region17
    $region16: #{tpu_custom_call.1} parent=1 // pred_region
      _
    $region17: #{tpu_custom_call.1} parent=1 // pred_fallthru
      _
    // Predicated region
    $region18: #{tpu_custom_call.1} parent=1 // pred_check
      _
    $region19: #{tpu_custom_call.1} parent=1 // pred_check_branch
      %45 = sbr.rel (0) target = $region21
    $region20: #{tpu_custom_call.1} parent=1 // pred_region
      %47 = dma.done [#allocation6], 768
    $region21: #{tpu_custom_call.1} parent=1 // pred_fallthru
      _
    // Predicated region
    $region22: #{tpu_custom_call.1} parent=1 // pred_check
      _
    $region23: #{tpu_custom_call.1} parent=1 // pred_check_branch
      %49 = sbr.rel (0) target = $region25
    $region24: #{tpu_custom_call.1} parent=1 // pred_region
      %51 = dma.done [#allocation9], 3072
    $region25: #{tpu_custom_call.1} parent=1 // pred_fallthru
      _
    %p52 = scmp.eq.s32.totalorder 0, 0
    // Predicated region
    $region26: #{tpu_custom_call.1} parent=1 // pred_check
      %p53 = pneg %p52
    $region27: #{tpu_custom_call.1} parent=1 // pred_check_branch
      %55 = sbr.rel (%p53) target = $region29
    $region28: #{tpu_custom_call.1} parent=1 // pred_region
      %v56 = vld [vmem:[%s4] sm:$0x1]
      %57 = vst [vmem:[#allocation2] sm:$0x1] %v56
    $region29: #{tpu_custom_call.1} parent=1 // pred_fallthru
      _
    %s58 = sld [smem:[#allocation4]]
    %p59 = scmp.gt.s32.totalorder %s58, 0
    %s60 = scalar_select %p59, %s58, 0
    %p61 = scmp.lt.s32.totalorder %s60, 15
    %s62 = scalar_select %p61, %s60, 15
    %s63 = sshra.s32 %s62, 3
    %s64 = sand.u32 %s62, 7
    %s65 = sshra.s32 %s62, 3
    %s66 = sand.u32 %s62, 7
    %s67 = smul.u32 %s63, 3
    %s68 = smul.u32 %s67, 8
    %s69 = sadd.s32 %s68, %s66
    %s70 = scalar_lea.vmem [#allocation5], %s69
    %v71 = vld [vmem:[%s70] ss:$8 sm:$0x7]
    %v72 = vld [vmem:[#allocation2] sm:$0x1]
    %v73 = vpack.c.bf16 %v72, %v72
    %v74 = vld [vmem:[#allocation8] sm:$0xff]
    %v75 = vld [vmem:[#allocation8 + $0x8] sm:$0xf]
    %v76 = vld [vmem:[#allocation8 + $0xc] sm:$0xff]
    %v77 = vld [vmem:[#allocation8 + $0x14] sm:$0xf]
    %v78 = vld [vmem:[#allocation8 + $0x18] sm:$0xff]
    %v79 = vld [vmem:[#allocation8 + $0x20] sm:$0xf]
    %v80 = vld [vmem:[#allocation8 + $0x24] sm:$0xff]
    %v81 = vld [vmem:[#allocation8 + $0x2c] sm:$0xf]
    %v82 = vld [vmem:[#allocation8 + $0x30] sm:$0xff]
    %v83 = vld [vmem:[#allocation8 + $0x38] sm:$0xf]
    %v84 = vld [vmem:[#allocation8 + $0x3c] sm:$0xff]
    %v85 = vld [vmem:[#allocation8 + $0x44] sm:$0xf]
    %v86 = vld [vmem:[#allocation8 + $0x48] sm:$0xff]
    %v87 = vld [vmem:[#allocation8 + $0x50] sm:$0xf]
    %v88 = vld [vmem:[#allocation8 + $0x54] sm:$0xff]
    %v89 = vld [vmem:[#allocation8 + $0x5c] sm:$0xf]
    %v90 = vld [vmem:[#allocation8 + $0x60] sm:$0xff]
    %v91 = vld [vmem:[#allocation8 + $0x68] sm:$0xf]
    %v92 = vld [vmem:[#allocation8 + $0x6c] sm:$0xff]
    %v93 = vld [vmem:[#allocation8 + $0x74] sm:$0xf]
    %v94 = vld [vmem:[#allocation8 + $0x78] sm:$0xff]
    %v95 = vld [vmem:[#allocation8 + $0x80] sm:$0xf]
    %v96 = vld [vmem:[#allocation8 + $0x84] sm:$0xff]
    %v97 = vld [vmem:[#allocation8 + $0x8c] sm:$0xf]
    %v98 = vld [vmem:[#allocation8 + $0x90] sm:$0xff]
    %v99 = vld [vmem:[#allocation8 + $0x98] sm:$0xf]
    %v100 = vld [vmem:[#allocation8 + $0x9c] sm:$0xff]
    %v101 = vld [vmem:[#allocation8 + $0xa4] sm:$0xf]
    %v102 = vld [vmem:[#allocation8 + $0xa8] sm:$0xff]
    %v103 = vld [vmem:[#allocation8 + $0xb0] sm:$0xf]
    %v104 = vld [vmem:[#allocation8 + $0xb4] sm:$0xff]
    %v105 = vld [vmem:[#allocation8 + $0xbc] sm:$0xf]
    %v106 = vld [vmem:[%s3] sm:$0x7]
    %v139 = vunpack.c.l.b16 %v74
    %v140 = vunpack.c.h.b16 %v74
    %v141 = vunpack.c.l.b16 %v75
    %v142 = vunpack.c.l.b16 %v76
    %v143 = vunpack.c.h.b16 %v76
    %v144 = vunpack.c.l.b16 %v77
    %v145 = vunpack.c.l.b16 %v78
    %v146 = vunpack.c.h.b16 %v78
    %v147 = vunpack.c.l.b16 %v79
    %v148 = vunpack.c.l.b16 %v80
    %v149 = vunpack.c.h.b16 %v80
    %v150 = vunpack.c.l.b16 %v81
    %v151 = vunpack.c.l.b16 %v82
    %v152 = vunpack.c.h.b16 %v82
    %v153 = vunpack.c.l.b16 %v83
    %v154 = vunpack.c.l.b16 %v84
    %v155 = vunpack.c.h.b16 %v84
    %v156 = vunpack.c.l.b16 %v85
    %v157 = vunpack.c.l.b16 %v86
    %v158 = vunpack.c.h.b16 %v86
    %v159 = vunpack.c.l.b16 %v87
    %v160 = vunpack.c.l.b16 %v88
    %v161 = vunpack.c.h.b16 %v88
    %v162 = vunpack.c.l.b16 %v89
    %v163 = vunpack.c.l.b16 %v90
    %v164 = vunpack.c.h.b16 %v90
    %v165 = vunpack.c.l.b16 %v91
    %v166 = vunpack.c.l.b16 %v92
    %v167 = vunpack.c.h.b16 %v92
    %v168 = vunpack.c.l.b16 %v93
    %v169 = vunpack.c.l.b16 %v94
    %v170 = vunpack.c.h.b16 %v94
    %v171 = vunpack.c.l.b16 %v95
    %v172 = vunpack.c.l.b16 %v96
    %v173 = vunpack.c.h.b16 %v96
    %v174 = vunpack.c.l.b16 %v97
    %v175 = vunpack.c.l.b16 %v98
    %v176 = vunpack.c.h.b16 %v98
    %v177 = vunpack.c.l.b16 %v99
    %v178 = vunpack.c.l.b16 %v100
    %v179 = vunpack.c.h.b16 %v100
    %v180 = vunpack.c.l.b16 %v101
    %v181 = vunpack.c.l.b16 %v102
    %v182 = vunpack.c.h.b16 %v102
    %v183 = vunpack.c.l.b16 %v103
    %v184 = vunpack.c.l.b16 %v104
    %v185 = vunpack.c.h.b16 %v104
    %v186 = vunpack.c.l.b16 %v105
    %v187 = vpack.c.b16 %v142, %v139
    %v188 = vpack.c.b16 %v143, %v140
    %v189 = vpack.c.b16 %v144, %v141
    %v190 = vpack.c.b16 %v148, %v145
    %v191 = vpack.c.b16 %v149, %v146
    %v192 = vpack.c.b16 %v150, %v147
    %v193 = vpack.c.b16 %v154, %v151
    %v194 = vpack.c.b16 %v155, %v152
    %v195 = vpack.c.b16 %v156, %v153
    %v196 = vpack.c.b16 %v160, %v157
    %v197 = vpack.c.b16 %v161, %v158
    %v198 = vpack.c.b16 %v162, %v159
    %v199 = vpack.c.b16 %v166, %v163
    %v200 = vpack.c.b16 %v167, %v164
    %v201 = vpack.c.b16 %v168, %v165
    %v202 = vpack.c.b16 %v172, %v169
    %v203 = vpack.c.b16 %v173, %v170
    %v204 = vpack.c.b16 %v174, %v171
    %v205 = vpack.c.b16 %v178, %v175
    %v206 = vpack.c.b16 %v179, %v176
    %v207 = vpack.c.b16 %v180, %v177
    %v208 = vpack.c.b16 %v184, %v181
    %v209 = vpack.c.b16 %v185, %v182
    %v210 = vpack.c.b16 %v186, %v183
    %v236 = vperm.slane %v106, 0
    %v237 = vperm.slane %v106, 1
    %v238 = vperm.slane %v106, 2
    %242 = vmatpush.bf16.msra.mxu0 %v208
    %243 = vmatpush.bf16.msra.mxu0 %v205
    %244 = vmatpush.bf16.msra.mxu0 %v202
    %245 = vmatpush.bf16.msra.mxu0 %v199
    %246 = vmatpush.bf16.msra.mxu0 %v196
    %247 = vmatpush.bf16.msra.mxu0 %v193
    %248 = vmatpush.bf16.msra.mxu0 %v190
    %249 = vmatpush.bf16.msra.mxu0 %v187
    %250 = vmatmul.bf16.gmra.mxu0 %v73
    %v251 = vpop.f32.mrf.mxu0
    %v252 = vadd.f32 %v236, %v251
    %v253 = vpop.f32.mrf.mxu0
    %254 = vdwg.mxu0
    %255 = vmatpush.bf16.msra.mxu0 %v209
    %256 = vmatpush.bf16.msra.mxu0 %v206
    %257 = vmatpush.bf16.msra.mxu0 %v203
    %258 = vmatpush.bf16.msra.mxu0 %v200
    %259 = vmatpush.bf16.msra.mxu0 %v197
    %260 = vmatpush.bf16.msra.mxu0 %v194
    %261 = vmatpush.bf16.msra.mxu0 %v191
    %262 = vmatpush.bf16.msra.mxu0 %v188
    %263 = vmatmul.bf16.gmra.mxu0 %v73
    %v264 = vpop.f32.mrf.mxu0
    %v265 = vadd.f32 %v237, %v264
    %v266 = vpop.f32.mrf.mxu0
    %267 = vdwg.mxu0
    %268 = vmatpush.bf16.msra.mxu0 %v210
    %269 = vmatpush.bf16.msra.mxu0 %v207
    %270 = vmatpush.bf16.msra.mxu0 %v204
    %271 = vmatpush.bf16.msra.mxu0 %v201
    %272 = vmatpush.bf16.msra.mxu0 %v198
    %273 = vmatpush.bf16.msra.mxu0 %v195
    %274 = vmatpush.bf16.msra.mxu0 %v192
    %275 = vmatpush.bf16.msra.mxu0 %v189
    %276 = vmatmul.bf16.gmra.mxu0 %v73
    %v277 = vpop.f32.mrf.mxu0
    %v278 = vadd.f32 %v238, %v277
    %v279 = vpop.f32.mrf.mxu0
    %280 = vdwg.mxu0
    %v281 = vadd.f32 %v71, %v252
    %v282 = vxor.u32 %v281, 2147483648
    %v283 = vmul.f32 %v282, 1.442695
    %v284 = vpow.pop %v283
    %v285 = vadd.f32 %v284, 1.0
    %v286 = vrcp.pop %v285
    %v287 = vmul.f32 %v285, %v286
    %v288 = vsub.f32 1.0, %v287
    %v289 = vmul.f32 %v286, %v288
    %v290 = vadd.f32 %v286, %v289
    %vm291 = vweird.f32 %v285
    %vm292 = vweird.f32 %v286
    %vm293 = vmor %vm291, %vm292
    %v294 = vsel %vm293, %v286, %v290
    %v295 = vand.u32 2147483647, %v285
    %vm296 = vcmp.eq.f32.partialorder %v295, 8.507059e+37
    %v297 = vand.u32 %v285, 2147483648
    %v298 = vor.u32 1.1754944e-38, %v297
    %v299 = vsel %vm296, %v298, %v294
    %v300 = vmul.f32 1.0, %v299
    %v302 = vrot.slane %v71, 1
    %v304 = vadd.f32 %v302, %v265
    %v305 = vxor.u32 %v304, 2147483648
    %v306 = vmul.f32 %v305, 1.442695
    %v307 = vpow.pop %v306
    %v308 = vadd.f32 %v307, 1.0
    %v309 = vrcp.pop %v308
    %v310 = vmul.f32 %v308, %v309
    %v311 = vsub.f32 1.0, %v310
    %v312 = vmul.f32 %v309, %v311
    %v313 = vadd.f32 %v309, %v312
    %vm314 = vweird.f32 %v308
    %vm315 = vweird.f32 %v309
    %vm316 = vmor %vm314, %vm315
    %v317 = vsel %vm316, %v309, %v313
    %v318 = vand.u32 2147483647, %v308
    %vm319 = vcmp.eq.f32.partialorder %v318, 8.507059e+37
    %v320 = vand.u32 %v308, 2147483648
    %v321 = vor.u32 1.1754944e-38, %v320
    %v322 = vsel %vm319, %v321, %v317
    %v323 = vmul.f32 1.0, %v322
    %v324 = vmul.f32 %v300, %v278
    %v325 = vrot.slane %v71, 2
    %v327 = vadd.f32 %v325, %v324
    %v328 = vtanh.pop %v327
    %v329 = vsub.f32 1.0, %v323
    %v330 = vmul.f32 %v329, %v328
    %v331 = vmul.f32 %v323, %v72
    %v332 = vadd.f32 %v330, %v331
    %333 = vst [vmem:[#allocation2] sm:$0x1] %v332
    %334 = vst [vmem:[#allocation10] sm:$0x1] %v332
    // Predicated region
    $region30: #{tpu_custom_call.1} parent=1 // pred_check
      _
    $region31: #{tpu_custom_call.1} parent=1 // pred_check_branch
      %336 = sbr.rel (0) target = $region33
    $region32: #{tpu_custom_call.1} parent=1 // pred_region
      %338 = vsyncadd [#allocation7], 0
      %s340 = sshll.u32 [#allocation10], 4
      %s341 = int_to_ptr.vmem [resolvable:$true] %s340
      %s342 = sshll.u32 %s5, 4
      %s343 = int_to_ptr.hbm [resolvable:$true] %s342
      %345 = dma.vmem_to_hbm [thread:$0]  %s341, 16, %s343, [#allocation7]
    $region33: #{tpu_custom_call.1} parent=1 // pred_fallthru
      _
    // Predicated region
    $region34: #{tpu_custom_call.1} parent=1 // pred_check
      _
    $region35: #{tpu_custom_call.1} parent=1 // pred_check_branch
      %347 = sbr.rel (0) target = $region37
    $region36: #{tpu_custom_call.1} parent=1 // pred_region
      %349 = dma.done [#allocation7], 16
    $region37: #{tpu_custom_call.1} parent=1 // pred_fallthru
      _
    %350 = vsyncpa [#allocation6], 1
    %351 = vsyncpa [#allocation9], 1
    %352 = vsyncpa [#allocation7], 1

</llo_original>
